<compile_context>
chip_gen: v6e
topology: v6e:2x2x1
jax: 0.10.0
libtpu: 0.0.40
codegen_flags: <defaults>
</compile_context>

<pallas_src>
import functools

import jax
import jax.numpy as jnp
from jax.experimental import pallas as pl
from jax.experimental.pallas import tpu as pltpu

_LANE = 128
_SUBLANE = 8
_TARGET_BLOCK_BYTES = 4 * 2**20     # aim for >= ~4 MiB of x per grid step
_MIN_STEP_BLOCK_BYTES = 1 * 2**20   # don't shrink below ~1 MiB just for step count
_MIN_GRID_STEPS = 8                 # keep several steps per TensorCore (v7x megacore)


def _round_up(x, m):
    return ((x + m - 1) // m) * m


def _largest_divisor(total, step, cap):
    """Largest d <= cap with d % step == 0 and total % d == 0 (total % step == 0)."""
    cap = max(step, min(cap, total))
    d = (cap // step) * step
    while d > step and total % d != 0:
        d -= step
    return d


@functools.lru_cache(maxsize=1)
def _vmem_budget():
    """Per-generation usable VMEM budget (bytes), with headroom for the compiler."""
    try:
        info = pltpu.get_tpu_info()
        phys = int(getattr(info, "vmem_capacity_bytes", 64 * 2**20))
    except Exception:
        phys = 64 * 2**20  # conservative fallback (v7x per-TensorCore VMEM)
    # ~75% of physical: 96 MiB on v5e/v6e (128 MiB), 48 MiB on v7x (64 MiB/TC).
    return (phys * 3) // 4


def lr_kernel(x_ref, w_ref, b_ref, o_ref):
    # x_ref: (tile_b, in_dim), w_ref: (in_dim, tile_n), b_ref: (1, tile_n)
    xb = x_ref[...]
    if xb.dtype != w_ref.dtype:
        xb = xb.astype(w_ref.dtype)           # no-op when the producer feeds bf16
    z = jnp.dot(xb, w_ref[...], preferred_element_type=jnp.float32)
    # bf16 epilogue when the output is bf16 (v6e/v7x VPU/EUP are bf16-capable;
    # harmless on v5e where the compiler promotes), f32 otherwise.
    ep = jnp.bfloat16 if o_ref.dtype == jnp.bfloat16 else jnp.float32
    z = z.astype(ep) + b_ref[...].astype(ep)
    den = 1.0 + jnp.exp(-z)                   # exp on the EUP slot
    # TODO(synk): pl.reciprocal(approx=True) is ~1e-3 relative; drop approx if
    # downstream needs exact f32 sigmoid probabilities.
    o_ref[...] = pl.reciprocal(den.astype(jnp.float32), approx=True).astype(o_ref.dtype)


def prepare_params(weight, bias, mxu_dtype=jnp.bfloat16):
    """One-time parameter prep (outside the per-call hot path).

    weight: (out_dim, in_dim)  -- PyTorch nn.Linear layout.
    bias:   (out_dim,)
    Returns:
      w_t: (in_dim, out_pad) transposed, zero-padded to a lane-dense multiple
           of 128, cast to the MXU dtype.
      b2:  (1, out_pad) zero-padded bias kept in f32.
    """
    out_dim, in_dim = weight.shape
    out_pad = _round_up(out_dim, _LANE)
    w_t = jnp.zeros((in_dim, out_pad), mxu_dtype)
    w_t = w_t.at[:, :out_dim].set(weight.T.astype(mxu_dtype))
    b2 = jnp.zeros((1, out_pad), jnp.float32)
    b2 = b2.at[0, :out_dim].set(bias.astype(jnp.float32))
    return w_t, b2


@functools.partial(
    jax.jit,
    static_argnames=("out_dim", "out_dtype", "vmem_budget", "trim", "single_buffer_resident"),
)
def _lr_forward_impl(x, w_t, b2, *, out_dim, out_dtype, vmem_budget, trim,
                     single_buffer_resident):
    B, in_dim = x.shape
    in_dim_w, out_pad = w_t.shape
    assert in_dim == in_dim_w
    assert out_pad % _LANE == 0, "use prepare_params() to lane-pad the weight"

    x_bytes = x.dtype.itemsize
    w_bytes = w_t.dtype.itemsize
    out_bytes = jnp.dtype(out_dtype).itemsize

    # Pad the batch only to the 8-row sublane granule (cheap, usually a no-op).
    B_pad = _round_up(B, _SUBLANE)
    if B_pad != B:
        x = jnp.pad(x, ((0, B_pad - B), (0, 0)))

    # ---- N tiling: keep the weight fully VMEM-resident if it is small enough,
    # otherwise tile the out dimension with multiple-of-128 blocks.
    w_full_bytes = in_dim * out_pad * w_bytes
    if w_full_bytes <= vmem_budget // 4:
        tile_n = out_pad
    else:
        per_col = 2 * in_dim * w_bytes  # double-buffered weight columns
        desired_n = max(_LANE, ((vmem_budget // 4) // per_col) // _LANE * _LANE)
        tile_n = _largest_divisor(out_pad, _LANE, desired_n)
    nn = out_pad // tile_n
    weight_is_resident = (nn == 1) and single_buffer_resident
    w_bufs = 1 if weight_is_resident else 2

    # ---- Batch tile: size by bytes, bounded by the VMEM budget.
    w_resident = w_bufs * in_dim * tile_n * w_bytes
    b_resident = w_bufs * tile_n * 4
    per_row = 2 * (in_dim * x_bytes + tile_n * out_bytes)  # double-buffered x / out
    tile_from_bytes = max(512, _TARGET_BLOCK_BYTES // (in_dim * x_bytes))
    tile_from_vmem = max(_SUBLANE, (vmem_budget - w_resident - b_resident) // per_row)
    desired_b = min(B_pad, tile_from_bytes, tile_from_vmem)
    # Keep >= ~_MIN_GRID_STEPS steps when blocks would still be >= ~1 MiB
    # (megacore sharding + double-buffering on v7x).
    tile_steps = max(_SUBLANE, (B_pad // _MIN_GRID_STEPS) // _SUBLANE * _SUBLANE)
    if tile_steps * in_dim * x_bytes >= _MIN_STEP_BLOCK_BYTES:
        desired_b = min(desired_b, tile_steps)
    desired_b = max(_SUBLANE, (desired_b // _SUBLANE) * _SUBLANE)
    tile_b = _largest_divisor(B_pad, _SUBLANE, desired_b)  # divides B_pad: no tile pad
    nb = B_pad // tile_b

    grid = (nb, nn)

    resident_kwargs = {}
    if weight_is_resident:
        # Constant index_map across the whole grid -> one buffer is enough,
        # freeing in_dim*out_pad*w_bytes of VMEM for a larger batch tile.
        resident_kwargs = dict(pipeline_mode=pl.Buffered(1))

    in_specs = [
        pl.BlockSpec((tile_b, in_dim), lambda i, j: (i, 0)),
        pl.BlockSpec((in_dim, tile_n), lambda i, j: (0, j), **resident_kwargs),
        pl.BlockSpec((1, tile_n), lambda i, j: (0, j), **resident_kwargs),
    ]
    out_specs = pl.BlockSpec((tile_b, tile_n), lambda i, j: (i, j))

    vmem_need = w_resident + b_resident + per_row * tile_b
    vmem_limit = int(min(vmem_budget, max(vmem_need + vmem_need // 4, 16 * 2**20)))

    w_reads = 1 if nn == 1 else nb
    cost = pl.CostEstimate(
        flops=2 * B_pad * in_dim * out_pad,
        transcendentals=B_pad * out_pad,
        bytes_accessed=(B_pad * in_dim * x_bytes
                        + w_reads * in_dim * out_pad * w_bytes
                        + w_reads * out_pad * 4
                        + B_pad * out_pad * out_bytes),
    )

    out = pl.pallas_call(
        lr_kernel,
        out_shape=jax.ShapeDtypeStruct((B_pad, out_pad), out_dtype),
        grid=grid,
        in_specs=in_specs,
        out_specs=out_specs,
        compiler_params=pltpu.CompilerParams(
            dimension_semantics=("parallel", "parallel"),
            vmem_limit_bytes=vmem_limit,
        ),
        cost_estimate=cost,
    )(x, w_t, b2)

    # Slice only when padding exists (and only if the caller wants trimming);
    # downstream code that can ignore lanes >= out_dim should pass trim=False
    # to avoid an extra HBM pass over the output.
    if trim and (B_pad != B or out_pad != out_dim):
        out = out[:B, :out_dim]
    return out


def lr_forward(x, w_t, b2, *, out_dim, out_dtype=None, trim=True):
    """Forward of LRTorchNet: sigmoid(x @ weight.T + bias), with prepared params.

    Pass x in bf16 (from its producer) to halve the dominant HBM read, and
    out_dtype=jnp.bfloat16 to halve the output writeback, when downstream allows.
    """
    if out_dtype is None:
        out_dtype = x.dtype
    out_dtype = jnp.dtype(out_dtype)
    budget = int(_vmem_budget())
    try:
        return _lr_forward_impl(x, w_t, b2, out_dim=out_dim, out_dtype=out_dtype,
                                vmem_budget=budget, trim=trim,
                                single_buffer_resident=True)
    except Exception:
        # Defensive fallback if single-buffer pipelining is rejected by this
        # jax/Mosaic version; identical semantics with default double buffering.
        return _lr_forward_impl(x, w_t, b2, out_dim=out_dim, out_dtype=out_dtype,
                                vmem_budget=budget, trim=trim,
                                single_buffer_resident=False)


if __name__ == "__main__":
    # Small shapes consistent with the module: batch=8, in_dim=32, out_dim=16.
    B, in_dim, out_dim = 8, 32, 16
    key = jax.random.PRNGKey(0)
    kx, kw, kb = jax.random.split(key, 3)

    x = jax.random.normal(kx, (B, in_dim), dtype=jnp.float32)
    # Deterministic parameter init mimicking nn.Linear's uniform(-1/sqrt(in), 1/sqrt(in)).
    limit = 1.0 / jnp.sqrt(jnp.float32(in_dim))
    weight = jax.random.uniform(kw, (out_dim, in_dim), jnp.float32, -limit, limit)
    bias = jax.random.uniform(kb, (out_dim,), jnp.float32, -limit, limit)

    # One-time parameter prep (transpose + lane-pad + bf16 cast), outside the hot path.
    w_t, b2 = prepare_params(weight, bias, mxu_dtype=jnp.bfloat16)

    out = lr_forward(x, w_t, b2, out_dim=out_dim)
    out = jax.block_until_ready(out)

    # Reference matching the kernel's bf16-MXU / f32-accum path, plus a pure-f32 one.
    ref_bf16 = jax.nn.sigmoid(
        jnp.dot(x.astype(jnp.bfloat16), weight.T.astype(jnp.bfloat16),
                preferred_element_type=jnp.float32) + bias)
    ref_f32 = jax.nn.sigmoid(x @ weight.T + bias)

    assert out.shape == (B, out_dim)
    assert jnp.allclose(out, ref_bf16, atol=1e-2, rtol=1e-2)
    assert jnp.allclose(out, ref_f32, atol=3e-2, rtol=3e-2)

    print("KERNEL_OK")
</pallas_src>

<mosaic_0001>
module attributes {stable_mosaic.version = 11 : i64} {
  func.func @lr_kernel(%arg0: i32, %arg1: i32, %arg2: memref<8x32xf32, #tpu.memory_space<vmem>>, %arg3: memref<32x128xbf16, #tpu.memory_space<vmem>>, %arg4: memref<1x128xf32, #tpu.memory_space<vmem>>, %arg5: memref<8x128xf32, #tpu.memory_space<vmem>>) attributes {dimension_semantics = [#tpu.dimension_semantics<parallel>, #tpu.dimension_semantics<parallel>], iteration_bounds = array<i64: 1, 1>, scalar_prefetch = 0 : i64, scratch_operands = 0 : i64, tpu.core_type = #tpu.core_type<tc>, window_params = [{transform_indices = @transform_0, window_bounds = array<i64: 8, 32>}, {pipeline_mode = #tpu.pipeline_mode<synchronous>, transform_indices = @transform_1, window_bounds = array<i64: 32, 128>}, {pipeline_mode = #tpu.pipeline_mode<synchronous>, transform_indices = @transform_2, window_bounds = array<i64: 1, 128>}, {transform_indices = @transform_3, window_bounds = array<i64: 8, 128>}]} {
    %c0 = arith.constant 0 : index
    %c0_0 = arith.constant 0 : index
    %0 = vector.load %arg2[%c0, %c0_0] : memref<8x32xf32, #tpu.memory_space<vmem>>, vector<8x32xf32>
    %1 = arith.truncf %0 : vector<8x32xf32> to vector<8x32xbf16>
    %c0_1 = arith.constant 0 : index
    %c0_2 = arith.constant 0 : index
    %2 = vector.load %arg3[%c0_1, %c0_2] : memref<32x128xbf16, #tpu.memory_space<vmem>>, vector<32x128xbf16>
    %cst = arith.constant dense<0.000000e+00> : vector<8x128xf32>
    %3 = tpu.matmul %1, %2, %cst {dimension_numbers = #tpu.dot_dimension_numbers<[1], [0], [0], [1], [0, 0, 1, 1], [], []>} : vector<8x32xbf16>, vector<32x128xbf16>, vector<8x128xf32> -> vector<8x128xf32>
    %c0_3 = arith.constant 0 : index
    %c0_4 = arith.constant 0 : index
    %4 = vector.load %arg4[%c0_3, %c0_4] : memref<1x128xf32, #tpu.memory_space<vmem>>, vector<1x128xf32>
    %5 = vector.broadcast %4 : vector<1x128xf32> to vector<8x128xf32>
    %6 = arith.addf %3, %5 : vector<8x128xf32>
    %cst_5 = arith.constant 0.000000e+00 : f32
    %7 = vector.broadcast %cst_5 : f32 to vector<8x128xf32>
    %8 = arith.subf %7, %6 : vector<8x128xf32>
    %9 = math.exp %8 : vector<8x128xf32>
    %cst_6 = arith.constant 1.000000e+00 : f32
    %10 = vector.broadcast %cst_6 : f32 to vector<8x128xf32>
    %11 = arith.addf %10, %9 : vector<8x128xf32>
    %12 = tpu.reciprocal %11 {approx = true} : vector<8x128xf32> -> vector<8x128xf32>
    %c0_7 = arith.constant 0 : index
    %c0_8 = arith.constant 0 : index
    %13 = vector.load %arg5[%c0_7, %c0_8] : memref<8x128xf32, #tpu.memory_space<vmem>>, vector<8x128xf32>
    tpu.vector_store %arg5[%c0_7, %c0_8], %12 {strides = array<i32>} : memref<8x128xf32, #tpu.memory_space<vmem>>, vector<8x128xf32>,
    return
  }
  func.func @transform_0(%arg0: i32, %arg1: i32) -> (i32, i32) {
    %c0_i32 = arith.constant 0 : i32
    %c0_i32_0 = arith.constant 0 : i32
    return %arg0, %c0_i32 : i32, i32
  }
  func.func @transform_1(%arg0: i32, %arg1: i32) -> (i32, i32) {
    %c0_i32 = arith.constant 0 : i32
    %c0_i32_0 = arith.constant 0 : i32
    return %c0_i32, %arg1 : i32, i32
  }
  func.func @transform_2(%arg0: i32, %arg1: i32) -> (i32, i32) {
    %c0_i32 = arith.constant 0 : i32
    %c0_i32_0 = arith.constant 0 : i32
    return %c0_i32, %arg1 : i32, i32
  }
  func.func @transform_3(%arg0: i32, %arg1: i32) -> (i32, i32) {
    %c0_i32 = arith.constant 0 : i32
    return %arg0, %arg1 : i32, i32
  }
}

module attributes {stable_mosaic.version = 11 : i64} {
  func.func @lr_kernel(%arg0: i32, %arg1: i32, %arg2: memref<8x32xf32, #tpu.memory_space<vmem>>, %arg3: memref<32x128xbf16, #tpu.memory_space<vmem>>, %arg4: memref<1x128xf32, #tpu.memory_space<vmem>>, %arg5: memref<8x128xf32, #tpu.memory_space<vmem>>) attributes {dimension_semantics = [#tpu.dimension_semantics<parallel>, #tpu.dimension_semantics<parallel>], iteration_bounds = array<i64: 1, 1>, scalar_prefetch = 0 : i64, scratch_operands = 0 : i64, tpu.core_type = #tpu.core_type<tc>, window_params = [{transform_indices = @transform_0, window_bounds = array<i64: 8, 32>}, {transform_indices = @transform_1, window_bounds = array<i64: 32, 128>}, {transform_indices = @transform_2, window_bounds = array<i64: 1, 128>}, {transform_indices = @transform_3, window_bounds = array<i64: 8, 128>}]} {
    %c0 = arith.constant 0 : index
    %c0_0 = arith.constant 0 : index
    %0 = vector.load %arg2[%c0, %c0_0] : memref<8x32xf32, #tpu.memory_space<vmem>>, vector<8x32xf32>
    %1 = arith.truncf %0 : vector<8x32xf32> to vector<8x32xbf16>
    %c0_1 = arith.constant 0 : index
    %c0_2 = arith.constant 0 : index
    %2 = vector.load %arg3[%c0_1, %c0_2] : memref<32x128xbf16, #tpu.memory_space<vmem>>, vector<32x128xbf16>
    %cst = arith.constant dense<0.000000e+00> : vector<8x128xf32>
    %3 = tpu.matmul %1, %2, %cst {dimension_numbers = #tpu.dot_dimension_numbers<[1], [0], [0], [1], [0, 0, 1, 1], [], []>} : vector<8x32xbf16>, vector<32x128xbf16>, vector<8x128xf32> -> vector<8x128xf32>
    %c0_3 = arith.constant 0 : index
    %c0_4 = arith.constant 0 : index
    %4 = vector.load %arg4[%c0_3, %c0_4] : memref<1x128xf32, #tpu.memory_space<vmem>>, vector<1x128xf32>
    %5 = vector.broadcast %4 : vector<1x128xf32> to vector<8x128xf32>
    %6 = arith.addf %3, %5 : vector<8x128xf32>
    %cst_5 = arith.constant 0.000000e+00 : f32
    %7 = vector.broadcast %cst_5 : f32 to vector<8x128xf32>
    %8 = arith.subf %7, %6 : vector<8x128xf32>
    %9 = math.exp %8 : vector<8x128xf32>
    %cst_6 = arith.constant 1.000000e+00 : f32
    %10 = vector.broadcast %cst_6 : f32 to vector<8x128xf32>
    %11 = arith.addf %10, %9 : vector<8x128xf32>
    %12 = tpu.reciprocal %11 {approx = true} : vector<8x128xf32> -> vector<8x128xf32>
    %c0_7 = arith.constant 0 : index
    %c0_8 = arith.constant 0 : index
    %13 = vector.load %arg5[%c0_7, %c0_8] : memref<8x128xf32, #tpu.memory_space<vmem>>, vector<8x128xf32>
    tpu.vector_store %arg5[%c0_7, %c0_8], %12 {strides = array<i32>} : memref<8x128xf32, #tpu.memory_space<vmem>>, vector<8x128xf32>,
    return
  }
  func.func @transform_0(%arg0: i32, %arg1: i32) -> (i32, i32) {
    %c0_i32 = arith.constant 0 : i32
    %c0_i32_0 = arith.constant 0 : i32
    return %arg0, %c0_i32 : i32, i32
  }
  func.func @transform_1(%arg0: i32, %arg1: i32) -> (i32, i32) {
    %c0_i32 = arith.constant 0 : i32
    %c0_i32_0 = arith.constant 0 : i32
    return %c0_i32, %arg1 : i32, i32
  }
  func.func @transform_2(%arg0: i32, %arg1: i32) -> (i32, i32) {
    %c0_i32 = arith.constant 0 : i32
    %c0_i32_0 = arith.constant 0 : i32
    return %c0_i32, %arg1 : i32, i32
  }
  func.func @transform_3(%arg0: i32, %arg1: i32) -> (i32, i32) {
    %c0_i32 = arith.constant 0 : i32
    return %arg0, %arg1 : i32, i32
  }
}

</mosaic_0001>

<llo_original>
// kernel: _lr_forward_impl.1
$region0: #{_lr_forward_impl.1}
  #allocation0 [shape = 'u32[]', space=smem, size = 0x4, offset = 0x4, fixed_abs, tag = 'smem constant byte address 0x4 - core index']
  #allocation1 [shape = 'u32[144,128]{1,0:T(1,128)}', space=vmem, size = 0x12000, scoped, tag = 'internal scratch']
  %s0 = inlined_call_operand.hbm [shape: f32[8,32], index: 0, kind: input, shape index: {}]
  %s1 = inlined_call_operand.hbm [shape: bf16[32,128], index: 1, kind: input, shape index: {}]
  %s2 = inlined_call_operand.vmem [shape: f32[1,128], index: 2, kind: input, shape index: {}]
  %s3 = inlined_call_operand.hbm [shape: f32[8,128], index: 3, kind: output, shape index: {}]
  %s4 = sld [smem:[#allocation0]]
  $region30: #{_lr_forward_impl.1} parent=0
    _
  %s6 = ssub.s32 1, %s4
  %s7 = scalar_select 0, %s6, %s4
  $region1: #{_lr_forward_impl.1} parent=0
    #allocation2 [shape = 'u8[4096]{0}', space=vmem, size = 0x1000, scoped, tag = 'input window, operand 0, single buffered']
    #allocation3 [shape = 's32[1]{0}', space=sflag, size = 0x4, scoped, tag = 'scoped memory for _lr_forward_impl.1']
    #allocation4 [shape = 's32[1]{0}', space=sflag, size = 0x4, scoped, tag = 'scoped memory for _lr_forward_impl.1']
    #allocation5 [shape = 'u8[8192]{0}', space=vmem, size = 0x2000, scoped, tag = 'input window, operand 1, single buffered']
    #allocation6 [shape = 's32[1]{0}', space=sflag, size = 0x4, scoped, tag = 'scoped memory for _lr_forward_impl.1']
    #allocation7 [shape = 'u8[4096]{0}', space=vmem, size = 0x1000, scoped, tag = 'output window, operand 0, single buffered']
    %8 = vsyncpa [#allocation3], 0
    %9 = vsyncpa [#allocation6], 0
    %10 = vsyncpa [#allocation4], 0
    // Predicated region
    $region2: #{_lr_forward_impl.1} parent=1 // pred_check
      _
    $region3: #{_lr_forward_impl.1} parent=1 // pred_check_branch
      %12 = sbr.rel (0) target = $region5
    $region4: #{_lr_forward_impl.1} parent=1 // pred_region
      %s14 = ssub.s32 128, 128
      %15 = vsyncadd [#allocation3], %s14
      %s17 = sshll.u32 [#allocation2], 4
      %s18 = int_to_ptr.vmem [resolvable:$true] %s17
      %20 = dma.hbm_to_vmem [thread:$0]  %s0, 128, %s18, [#allocation3]
    $region5: #{_lr_forward_impl.1} parent=1 // pred_fallthru
      _
    // Predicated region
    $region6: #{_lr_forward_impl.1} parent=1 // pred_check
      _
    $region7: #{_lr_forward_impl.1} parent=1 // pred_check_branch
      %22 = sbr.rel (0) target = $region9
    $region8: #{_lr_forward_impl.1} parent=1 // pred_region
      %s24 = ssub.s32 256, 256
      %25 = vsyncadd [#allocation6], %s24
      %s26 = sshll.u32 [#allocation5], 4
      %s27 = int_to_ptr.vmem [resolvable:$true] %s26
      %32 = dma.hbm_to_vmem [thread:$0]  %s1, 256, %s27, [#allocation6], 64, 64, 4
    $region9: #{_lr_forward_impl.1} parent=1 // pred_fallthru
      _
    // Predicated region
    $region10: #{_lr_forward_impl.1} parent=1 // pred_check
      _
    $region11: #{_lr_forward_impl.1} parent=1 // pred_check_branch
      %34 = sbr.rel (0) target = $region13
    $region12: #{_lr_forward_impl.1} parent=1 // pred_region
      _
    $region13: #{_lr_forward_impl.1} parent=1 // pred_fallthru
      _
    // Predicated region
    $region14: #{_lr_forward_impl.1} parent=1 // pred_check
      _
    $region15: #{_lr_forward_impl.1} parent=1 // pred_check_branch
      %36 = sbr.rel (0) target = $region17
    $region16: #{_lr_forward_impl.1} parent=1 // pred_region
      %37 = dma.done [#allocation3], 128
    $region17: #{_lr_forward_impl.1} parent=1 // pred_fallthru
      _
    // Predicated region
    $region18: #{_lr_forward_impl.1} parent=1 // pred_check
      _
    $region19: #{_lr_forward_impl.1} parent=1 // pred_check_branch
      %39 = sbr.rel (0) target = $region21
    $region20: #{_lr_forward_impl.1} parent=1 // pred_region
      %40 = dma.done [#allocation6], 256
    $region21: #{_lr_forward_impl.1} parent=1 // pred_fallthru
      _
    %v42 = vld [vmem:[#allocation2] sm:$0xff]
    %v43 = vpack.c.bf16 %v42, %v42
    %v44 = vld [vmem:[#allocation5] sm:$0xf]
    %v45 = vld [vmem:[#allocation5 + $0x4] sm:$0xf]
    %v46 = vld [vmem:[#allocation5 + $0x8] sm:$0xf]
    %v47 = vld [vmem:[#allocation5 + $0xc] sm:$0xf]
    %v48 = vld [vmem:[%s2] sm:$0x1]
    %v50 = vlaneseq
    %v51 = vshrl.u32 %v50, 7
    %v52 = vsub.s32 0, %v51
    %v53 = vrot.slane %v48, %v52
    %v59 = vunpack.c.l.b16 %v44
    %v60 = vunpack.c.l.b16 %v45
    %v61 = vunpack.c.l.b16 %v46
    %v62 = vunpack.c.l.b16 %v47
    %v63 = vpack.c.b16 %v60, %v59
    %v64 = vpack.c.b16 %v62, %v61
    %vm67 = vcmask 261120
    %v69 = vsel %vm67, %v43, 0
    %71 = vmatprep.subr.bf16.mxu0 0
    %72 = vmatpush1.bf16.msra.mxu0 0
    %73 = vmatprep.subr.bf16.mxu0 0
    %74 = vmatpush1.bf16.msra.mxu0 0
    %75 = vmatprep.subr.bf16.mxu0 0
    %76 = vmatpush1.bf16.msra.mxu0 0
    %77 = vmatprep.subr.bf16.mxu0 0
    %78 = vmatpush1.bf16.msra.mxu0 0
    %79 = vmatprep.subr.bf16.mxu0 0
    %80 = vmatpush1.bf16.msra.mxu0 0
    %81 = vmatprep.subr.bf16.mxu0 0
    %82 = vmatpush1.bf16.msra.mxu0 0
    %83 = vmatprep.subr.bf16.mxu0 0
    %84 = vmatpush1.bf16.msra.mxu0 %v64
    %85 = vmatprep.subr.bf16.mxu0 0
    %86 = vmatpush1.bf16.msra.mxu0 %v63
    %87 = vmatprep.subr.bf16.mxu0 0
    %88 = vmatpush2.bf16.msra.mxu0 0
    %89 = vmatprep.subr.bf16.mxu0 0
    %90 = vmatpush2.bf16.msra.mxu0 0
    %91 = vmatprep.subr.bf16.mxu0 0
    %92 = vmatpush2.bf16.msra.mxu0 0
    %93 = vmatprep.subr.bf16.mxu0 0
    %94 = vmatpush2.bf16.msra.mxu0 0
    %95 = vmatprep.subr.bf16.mxu0 0
    %96 = vmatpush2.bf16.msra.mxu0 0
    %97 = vmatprep.subr.bf16.mxu0 0
    %98 = vmatpush2.bf16.msra.mxu0 0
    %99 = vmatprep.subr.bf16.mxu0 0
    %100 = vmatpush2.bf16.msra.mxu0 0
    %101 = vmatprep.subr.bf16.mxu0 0
    %102 = vmatpush2.bf16.msra.mxu0 0
    %103 = vmatprep.mubr.bf16.mxu0 0
    %104 = vmatmul.mubr.bf16.gmra.mxu0 %v69
    %v105 = vpop.f32.mrf.mxu0
    %v106 = vadd.f32 %v53, %v105
    %v107 = vpop.f32.mrf.mxu0
    %v108 = vpop.f32.mrf.mxu0
    %v109 = vpop.f32.mrf.mxu0
    %110 = vdwg.mxu0
    %v111 = vsub.f32 0.0, %v106
    %v112 = vmul.f32 %v111, 1.442695
    %v113 = vpow.pop %v112
    %v114 = vadd.f32 %v113, 1.0
    %v115 = vrcp.pop %v114
    %116 = vst [vmem:[#allocation7] sm:$0xff] %v115
    // Predicated region
    $region22: #{_lr_forward_impl.1} parent=1 // pred_check
      _
    $region23: #{_lr_forward_impl.1} parent=1 // pred_check_branch
      %118 = sbr.rel (0) target = $region25
    $region24: #{_lr_forward_impl.1} parent=1 // pred_region
      %s120 = ssub.s32 128, 128
      %121 = vsyncadd [#allocation4], %s120
      %s123 = sshll.u32 [#allocation7], 4
      %s124 = int_to_ptr.vmem [resolvable:$true] %s123
      %126 = dma.vmem_to_hbm [thread:$0]  %s124, 128, %s3, [#allocation4]
    $region25: #{_lr_forward_impl.1} parent=1 // pred_fallthru
      _
    // Predicated region
    $region26: #{_lr_forward_impl.1} parent=1 // pred_check
      _
    $region27: #{_lr_forward_impl.1} parent=1 // pred_check_branch
      %128 = sbr.rel (0) target = $region29
    $region28: #{_lr_forward_impl.1} parent=1 // pred_region
      %129 = dma.done [#allocation4], 128
    $region29: #{_lr_forward_impl.1} parent=1 // pred_fallthru
      _
    %130 = vsyncpa [#allocation3], 1
    %131 = vsyncpa [#allocation6], 1
    %132 = vsyncpa [#allocation4], 1

// kernel: _lr_forward_impl.1
$region0: #{_lr_forward_impl.1}
  #allocation0 [shape = 'u32[]', space=smem, size = 0x4, offset = 0x4, fixed_abs, tag = 'smem constant byte address 0x4 - core index']
  #allocation1 [shape = 'u32[144,128]{1,0:T(1,128)}', space=vmem, size = 0x12000, scoped, tag = 'internal scratch']
  %s0 = inlined_call_operand.hbm [shape: f32[8,32], index: 0, kind: input, shape index: {}]
  %s1 = inlined_call_operand.hbm [shape: bf16[32,128], index: 1, kind: input, shape index: {}]
  %s2 = inlined_call_operand.vmem [shape: f32[1,128], index: 2, kind: input, shape index: {}]
  %s3 = inlined_call_operand.hbm [shape: f32[8,128], index: 3, kind: output, shape index: {}]
  %s4 = sld [smem:[#allocation0]]
  $region30: #{_lr_forward_impl.1} parent=0
    _
  %s6 = ssub.s32 1, %s4
  %s7 = scalar_select 0, %s6, %s4
  $region1: #{_lr_forward_impl.1} parent=0
    #allocation2 [shape = 'u8[4096]{0}', space=vmem, size = 0x1000, scoped, tag = 'input window, operand 0, single buffered']
    #allocation3 [shape = 's32[1]{0}', space=sflag, size = 0x4, scoped, tag = 'scoped memory for _lr_forward_impl.1']
    #allocation4 [shape = 's32[1]{0}', space=sflag, size = 0x4, scoped, tag = 'scoped memory for _lr_forward_impl.1']
    #allocation5 [shape = 'u8[8192]{0}', space=vmem, size = 0x2000, scoped, tag = 'input window, operand 1, single buffered']
    #allocation6 [shape = 's32[1]{0}', space=sflag, size = 0x4, scoped, tag = 'scoped memory for _lr_forward_impl.1']
    #allocation7 [shape = 'u8[4096]{0}', space=vmem, size = 0x1000, scoped, tag = 'output window, operand 0, single buffered']
    %8 = vsyncpa [#allocation3], 0
    %9 = vsyncpa [#allocation6], 0
    %10 = vsyncpa [#allocation4], 0
    // Predicated region
    $region2: #{_lr_forward_impl.1} parent=1 // pred_check
      _
    $region3: #{_lr_forward_impl.1} parent=1 // pred_check_branch
      %12 = sbr.rel (0) target = $region5
    $region4: #{_lr_forward_impl.1} parent=1 // pred_region
      %s14 = ssub.s32 128, 128
      %15 = vsyncadd [#allocation3], %s14
      %s17 = sshll.u32 [#allocation2], 4
      %s18 = int_to_ptr.vmem [resolvable:$true] %s17
      %20 = dma.hbm_to_vmem [thread:$0]  %s0, 128, %s18, [#allocation3]
    $region5: #{_lr_forward_impl.1} parent=1 // pred_fallthru
      _
    // Predicated region
    $region6: #{_lr_forward_impl.1} parent=1 // pred_check
      _
    $region7: #{_lr_forward_impl.1} parent=1 // pred_check_branch
      %22 = sbr.rel (0) target = $region9
    $region8: #{_lr_forward_impl.1} parent=1 // pred_region
      %s24 = ssub.s32 256, 256
      %25 = vsyncadd [#allocation6], %s24
      %s26 = sshll.u32 [#allocation5], 4
      %s27 = int_to_ptr.vmem [resolvable:$true] %s26
      %32 = dma.hbm_to_vmem [thread:$0]  %s1, 256, %s27, [#allocation6], 64, 64, 4
    $region9: #{_lr_forward_impl.1} parent=1 // pred_fallthru
      _
    // Predicated region
    $region10: #{_lr_forward_impl.1} parent=1 // pred_check
      _
    $region11: #{_lr_forward_impl.1} parent=1 // pred_check_branch
      %34 = sbr.rel (0) target = $region13
    $region12: #{_lr_forward_impl.1} parent=1 // pred_region
      _
    $region13: #{_lr_forward_impl.1} parent=1 // pred_fallthru
      _
    // Predicated region
    $region14: #{_lr_forward_impl.1} parent=1 // pred_check
      _
    $region15: #{_lr_forward_impl.1} parent=1 // pred_check_branch
      %36 = sbr.rel (0) target = $region17
    $region16: #{_lr_forward_impl.1} parent=1 // pred_region
      %37 = dma.done [#allocation3], 128
    $region17: #{_lr_forward_impl.1} parent=1 // pred_fallthru
      _
    // Predicated region
    $region18: #{_lr_forward_impl.1} parent=1 // pred_check
      _
    $region19: #{_lr_forward_impl.1} parent=1 // pred_check_branch
      %39 = sbr.rel (0) target = $region21
    $region20: #{_lr_forward_impl.1} parent=1 // pred_region
      %40 = dma.done [#allocation6], 256
    $region21: #{_lr_forward_impl.1} parent=1 // pred_fallthru
      _
    %v42 = vld [vmem:[#allocation2] sm:$0xff]
    %v43 = vpack.c.bf16 %v42, %v42
    %v44 = vld [vmem:[#allocation5] sm:$0xf]
    %v45 = vld [vmem:[#allocation5 + $0x4] sm:$0xf]
    %v46 = vld [vmem:[#allocation5 + $0x8] sm:$0xf]
    %v47 = vld [vmem:[#allocation5 + $0xc] sm:$0xf]
    %v48 = vld [vmem:[%s2] sm:$0x1]
    %v50 = vlaneseq
    %v51 = vshrl.u32 %v50, 7
    %v52 = vsub.s32 0, %v51
    %v53 = vrot.slane %v48, %v52
    %v59 = vunpack.c.l.b16 %v44
    %v60 = vunpack.c.l.b16 %v45
    %v61 = vunpack.c.l.b16 %v46
    %v62 = vunpack.c.l.b16 %v47
    %v63 = vpack.c.b16 %v60, %v59
    %v64 = vpack.c.b16 %v62, %v61
    %vm67 = vcmask 261120
    %v69 = vsel %vm67, %v43, 0
    %71 = vmatprep.subr.bf16.mxu0 0
    %72 = vmatpush1.bf16.msra.mxu0 0
    %73 = vmatprep.subr.bf16.mxu0 0
    %74 = vmatpush1.bf16.msra.mxu0 0
    %75 = vmatprep.subr.bf16.mxu0 0
    %76 = vmatpush1.bf16.msra.mxu0 0
    %77 = vmatprep.subr.bf16.mxu0 0
    %78 = vmatpush1.bf16.msra.mxu0 0
    %79 = vmatprep.subr.bf16.mxu0 0
    %80 = vmatpush1.bf16.msra.mxu0 0
    %81 = vmatprep.subr.bf16.mxu0 0
    %82 = vmatpush1.bf16.msra.mxu0 0
    %83 = vmatprep.subr.bf16.mxu0 0
    %84 = vmatpush1.bf16.msra.mxu0 %v64
    %85 = vmatprep.subr.bf16.mxu0 0
    %86 = vmatpush1.bf16.msra.mxu0 %v63
    %87 = vmatprep.subr.bf16.mxu0 0
    %88 = vmatpush2.bf16.msra.mxu0 0
    %89 = vmatprep.subr.bf16.mxu0 0
    %90 = vmatpush2.bf16.msra.mxu0 0
    %91 = vmatprep.subr.bf16.mxu0 0
    %92 = vmatpush2.bf16.msra.mxu0 0
    %93 = vmatprep.subr.bf16.mxu0 0
    %94 = vmatpush2.bf16.msra.mxu0 0
    %95 = vmatprep.subr.bf16.mxu0 0
    %96 = vmatpush2.bf16.msra.mxu0 0
    %97 = vmatprep.subr.bf16.mxu0 0
    %98 = vmatpush2.bf16.msra.mxu0 0
    %99 = vmatprep.subr.bf16.mxu0 0
    %100 = vmatpush2.bf16.msra.mxu0 0
    %101 = vmatprep.subr.bf16.mxu0 0
    %102 = vmatpush2.bf16.msra.mxu0 0
    %103 = vmatprep.mubr.bf16.mxu0 0
    %104 = vmatmul.mubr.bf16.gmra.mxu0 %v69
    %v105 = vpop.f32.mrf.mxu0
    %v106 = vadd.f32 %v53, %v105
    %v107 = vpop.f32.mrf.mxu0
    %v108 = vpop.f32.mrf.mxu0
    %v109 = vpop.f32.mrf.mxu0
    %110 = vdwg.mxu0
    %v111 = vsub.f32 0.0, %v106
    %v112 = vmul.f32 %v111, 1.442695
    %v113 = vpow.pop %v112
    %v114 = vadd.f32 %v113, 1.0
    %v115 = vrcp.pop %v114
    %116 = vst [vmem:[#allocation7] sm:$0xff] %v115
    // Predicated region
    $region22: #{_lr_forward_impl.1} parent=1 // pred_check
      _
    $region23: #{_lr_forward_impl.1} parent=1 // pred_check_branch
      %118 = sbr.rel (0) target = $region25
    $region24: #{_lr_forward_impl.1} parent=1 // pred_region
      %s120 = ssub.s32 128, 128
      %121 = vsyncadd [#allocation4], %s120
      %s123 = sshll.u32 [#allocation7], 4
      %s124 = int_to_ptr.vmem [resolvable:$true] %s123
      %126 = dma.vmem_to_hbm [thread:$0]  %s124, 128, %s3, [#allocation4]
    $region25: #{_lr_forward_impl.1} parent=1 // pred_fallthru
      _
    // Predicated region
    $region26: #{_lr_forward_impl.1} parent=1 // pred_check
      _
    $region27: #{_lr_forward_impl.1} parent=1 // pred_check_branch
      %128 = sbr.rel (0) target = $region29
    $region28: #{_lr_forward_impl.1} parent=1 // pred_region
      %129 = dma.done [#allocation4], 128
    $region29: #{_lr_forward_impl.1} parent=1 // pred_fallthru
      _
    %130 = vsyncpa [#allocation3], 1
    %131 = vsyncpa [#allocation6], 1
    %132 = vsyncpa [#allocation4], 1

</llo_original>
